<compile_context>
chip_gen: v5e
topology: v5e:2x2
jax: 0.10.0
libtpu: 0.0.40
codegen_flags: <defaults>
</compile_context>

<pallas_src>
import functools

import numpy as np

import jax
import jax.numpy as jnp
from jax import lax
from jax.experimental import pallas as pl
from jax.experimental.pallas import tpu as pltpu


# ----------------------------------------------------------------------------- kernel

def _make_gated_deconv_kernel(tap_plan, lo, h_rows):
    """Builds the fused kernel for a static height tap plan.

    tap_plan: tuple over output-row parity ry of a tuple of source-row offsets dy.  The
              banded weight for parity ry is the row-stack of the per-dy blocks in the same
              order, so `concat_dy(x[iy + dy, :]) @ w_ref[ry]` performs the whole convolution
              (height taps + width upsample/pad + Cin contraction + conv|mask branches).
    lo:       number of zero rows padded at the top of the input block (row lo + iy + dy is
              therefore always in range; the pad rows implement the height zero padding).
    h_rows:   number of original input rows H (= output rows per parity).
    """

    def kernel(x_ref, w_ref, b_ref, o_ref):
        # x_ref: (1, lo + H + hi, W*Cin) f32   zero-row-padded original-resolution input
        # w_ref: (scale, n_tap*W*Cin, 2*Wo*Cout) bf16  banded fused weights  (VMEM-resident)
        # b_ref: (1, 2*Wo*Cout) f32                    fused bias [conv | mask] (resident)
        # o_ref: (1, scale, H, Wo*Cout)                per-parity gated output planes
        half = w_ref.shape[-1] // 2
        bias = b_ref[...]                                        # (1, 2*Wo*Cout) f32

        # Distinct shifted source-row slabs, as static sublane slices (no S matmul, no roll).
        need = sorted({dy for taps in tap_plan for dy in taps})
        xs = {dy: x_ref[0, lo + dy:lo + dy + h_rows, :] for dy in need}

        for ry, taps in enumerate(tap_plan):
            parts = [xs[dy] for dy in taps]
            lhs = parts[0] if len(parts) == 1 else jnp.concatenate(parts, axis=1)
            lhs = lhs.astype(jnp.bfloat16)                       # bf16 MXU operand
            # One MXU push per parity: M=H, K=n_tap*W*Cin (=128), N=2*Wo*Cout (=512),
            # f32 accumulation.  Bias is a tiny exact f32 VPU add.
            acc = jnp.dot(lhs, w_ref[ry],
                          preferred_element_type=jnp.float32) + bias
            # conv * sigmoid(mask): exp on the EUP, divide as approx reciprocal (EUP slot).
            gate = pl.reciprocal(1.0 + jnp.exp(-acc[:, half:]), approx=True)
            # 128-aligned gate split (half = Wo*Cout = 256); 256-lane dense store.
            o_ref[0, ry] = (acc[:, :half] * gate).astype(o_ref.dtype)

    return kernel


# --------------------------------------------------------------------------- wrapper

def _nearest_pad_matrix(n_out, n_in, tap, pad, scale):
    """M[o, i] = 1 iff position (o + tap) of the zero-padded, x`scale` nearest-upsampled
    axis comes from original element i (pad positions give an all-zero row)."""
    m = np.zeros((n_out, n_in), np.float32)
    for o in range(n_out):
        q = o + tap - pad
        if 0 <= q < scale * n_in:
            m[o, q // scale] = 1.0
    return m


def _banded_width_weight(wt_kwico, q_cols):
    """Fold the width-direction upsample/pad/kw placement into the weight.

    wt_kwico: (KW, Cin, Cout) traced weight for one (grouped) height tap
    q_cols:   (KW, Wo, W) numpy 0/1 placement matrices
    returns:  (W*Cin, Wo*Cout) with rows (w, ci) and columns (ow, co)
    """
    band = jnp.einsum('qow,qic->wioc', jnp.asarray(q_cols, wt_kwico.dtype), wt_kwico)
    _, wo, w_in = q_cols.shape
    _, cin, cout = wt_kwico.shape
    return band.reshape(w_in * cin, wo * cout)


def gated_deconv2d_pallas(x_nchw, wc_oihw, bc, wm_oihw, bm, *,
                          kernel_size, padding, scale_factor=2.0):
    """GatedDeConv2d forward.  Input/output are NCHW float32 (PyTorch layout);
    weights are OIHW, biases are (Cout,) (PyTorch nn.Conv2d layout)."""
    assert float(scale_factor) == int(scale_factor) and int(scale_factor) >= 1, \
        "only integer nearest-neighbor scale factors are supported"
    scale = int(scale_factor)

    n, cin, h, w = x_nchw.shape
    cout = wc_oihw.shape[0]
    k = kernel_size
    ho = scale * h + 2 * padding - k + 1
    wo = scale * w + 2 * padding - k + 1
    # Sub-pixel height decomposition requires every output-row parity to own exactly H rows.
    # TODO(synk): general pad/stride (2*padding != kernel_size-1) needs a dense fallback.
    assert ho == scale * h, "kernel specialized to 2*padding == kernel_size - 1, stride 1"

    # OIHW -> HWIO
    wc_h = jnp.transpose(wc_oihw, (2, 3, 1, 0))                  # (KH, KW, Cin, Cout)
    wm_h = jnp.transpose(wm_oihw, (2, 3, 1, 0))

    # --- group the kernel's height taps by source-row offset dy, per output-row parity ---
    groups = []
    for ry in range(scale):
        by_dy = {}
        for kh in range(k):
            dy = (ry + kh - padding) // scale                    # floor div (handles dy < 0)
            if dy in by_dy:
                by_dy[dy] = (by_dy[dy][0] + wc_h[kh], by_dy[dy][1] + wm_h[kh])
            else:
                by_dy[dy] = (wc_h[kh], wm_h[kh])
        groups.append(sorted(by_dy.items()))
    n_tap = max(len(g) for g in groups)
    zero_tap = (jnp.zeros((k, cin, cout), wc_h.dtype),) * 2
    groups = [g + [(0, zero_tap)] * (n_tap - len(g)) for g in groups]
    tap_plan = tuple(tuple(dy for dy, _ in g) for g in groups)   # e.g. ((-1, 0), (0, 1))
    dys = [dy for taps in tap_plan for dy in taps]
    lo, hi = max(0, -min(dys)), max(0, max(dys))

    # --- fold width upsample/pad into banded, conv|mask-fused bf16 weights (trace time) ---
    q_cols = np.stack([_nearest_pad_matrix(wo, w, kw, padding, scale) for kw in range(k)])
    w_parity = []
    for g in groups:
        blocks = [jnp.concatenate([_banded_width_weight(wct, q_cols),
                                   _banded_width_weight(wmt, q_cols)], axis=1)
                  for _, (wct, wmt) in g]
        w_parity.append(jnp.concatenate(blocks, axis=0))         # (n_tap*W*Cin, 2*Wo*Cout)
    w_fused = jnp.stack(w_parity).astype(jnp.bfloat16)           # (scale, n_tap*W*Cin, 2*Wo*Cout)
    b_fused = jnp.concatenate([jnp.tile(bc, wo),
                               jnp.tile(bm, wo)])[None, :].astype(jnp.float32)

    # --- zero-row-padded, lane-flattened ORIGINAL-resolution input (no upsample in HBM) ---
    wc_lanes = w * cin
    x_rows = jnp.transpose(x_nchw, (0, 2, 3, 1)).reshape(n, h, wc_lanes)
    x_rows = jnp.pad(x_rows, ((0, 0), (lo, hi), (0, 0)))         # (N, lo+H+hi, W*Cin) f32

    out_pl = pl.pallas_call(
        _make_gated_deconv_kernel(tap_plan, lo, h),
        out_shape=jax.ShapeDtypeStruct((n, scale, h, wo * cout), x_nchw.dtype),
        grid=(n,),                                               # batch = parallel grid axis
        in_specs=[
            pl.BlockSpec((1, h + lo + hi, wc_lanes), lambda i: (i, 0, 0)),
            # constant index maps -> weight/bias DMA'd once, stay VMEM-resident for all images
            pl.BlockSpec((scale, n_tap * wc_lanes, 2 * wo * cout), lambda i: (0, 0, 0)),
            pl.BlockSpec((1, 2 * wo * cout), lambda i: (0, 0)),
        ],
        out_specs=pl.BlockSpec((1, scale, h, wo * cout), lambda i: (i, 0, 0, 0)),
        compiler_params=pltpu.CompilerParams(
            dimension_semantics=("parallel",),
            vmem_limit_bytes=32 * 1024 * 1024,
        ),
    )(x_rows, w_fused, b_fused)

    # (N, ry, iy, (ow, co)) -> NCHW with oy = scale*iy + ry (matches the PyTorch layout).
    out = out_pl.reshape(n, scale, h, wo, cout)
    return jnp.transpose(out, (0, 4, 2, 1, 3)).reshape(n, cout, scale * h, wo)


# ------------------------------------------------------------------ parameter setup / reference

def spectral_normalize(w_oihw, key, n_iters=5, eps=1e-12):
    """Plain-JAX parameter setup mirroring torch.nn.utils.spectral_norm: divide the weight
    (flattened to (Cout, -1)) by its leading singular value (fresh power iteration)."""
    cout = w_oihw.shape[0]
    w2d = w_oihw.reshape(cout, -1)
    u = jax.random.normal(key, (cout,), dtype=w_oihw.dtype)
    u = u / (jnp.linalg.norm(u) + eps)
    v = None
    for _ in range(n_iters):
        v = w2d.T @ u
        v = v / (jnp.linalg.norm(v) + eps)
        u = w2d @ v
        u = u / (jnp.linalg.norm(u) + eps)
    sigma = u @ (w2d @ v)
    return w_oihw / sigma


def reference_gated_deconv(x_nchw, wc_oihw, bc, wm_oihw, bm, *, padding, scale_factor=2.0):
    """Pure-JAX f32 reference (lax.conv on the explicitly upsampled/padded input)."""
    scale = int(scale_factor)
    up = jnp.repeat(jnp.repeat(x_nchw, scale, axis=2), scale, axis=3)
    xh = jnp.transpose(up, (0, 2, 3, 1))
    xh = jnp.pad(xh, ((0, 0), (padding, padding), (padding, padding), (0, 0)))
    wc = jnp.transpose(wc_oihw, (2, 3, 1, 0))
    wm = jnp.transpose(wm_oihw, (2, 3, 1, 0))
    dn = ('NHWC', 'HWIO', 'NHWC')
    conv = lax.conv_general_dilated(xh, wc, (1, 1), 'VALID', dimension_numbers=dn) + bc
    mask = lax.conv_general_dilated(xh, wm, (1, 1), 'VALID', dimension_numbers=dn) + bm
    out = conv * jax.nn.sigmoid(mask)
    return jnp.transpose(out, (0, 3, 1, 2))


# ------------------------------------------------------------------------------- main

if __name__ == "__main__":
    # Module config: GatedDeConv2d(in=4, out=8, kernel_size=3, stride=1, padding=1,
    #                              padding_type='zero', sn=True, scale_factor=2.0)
    in_channels, out_channels, kernel_size, padding = 4, 8, 3, 1
    scale_factor = 2.0

    key = jax.random.PRNGKey(0)
    kx, kwc, kbc, kwm, kbm, ku1, ku2 = jax.random.split(key, 7)

    # Deterministic synthetic parameters (PyTorch Conv2d layouts: weight OIHW, bias (Cout,)).
    x = jax.random.normal(kx, (2, in_channels, 16, 16), dtype=jnp.float32)
    wc_oihw = jax.random.normal(
        kwc, (out_channels, in_channels, kernel_size, kernel_size), jnp.float32) * 0.1
    wm_oihw = jax.random.normal(
        kwm, (out_channels, in_channels, kernel_size, kernel_size), jnp.float32) * 0.1
    bc = jax.random.normal(kbc, (out_channels,), jnp.float32) * 0.1
    bm = jax.random.normal(kbm, (out_channels,), jnp.float32) * 0.1

    # sn=True: spectral-normalize both conv weights (parameter setup, plain JAX).
    wc_oihw = spectral_normalize(wc_oihw, ku1)
    wm_oihw = spectral_normalize(wm_oihw, ku2)

    run = functools.partial(gated_deconv2d_pallas,
                            kernel_size=kernel_size, padding=padding,
                            scale_factor=scale_factor)
    out = jax.jit(run)(x, wc_oihw, bc, wm_oihw, bm)
    out = jax.block_until_ready(out)

    ref = reference_gated_deconv(x, wc_oihw, bc, wm_oihw, bm,
                                 padding=padding, scale_factor=scale_factor)
    ref = jax.block_until_ready(ref)

    assert out.shape == (2, out_channels, 32, 32), out.shape
    # bf16 MXU operands (f32 accumulation) vs the f32 reference -> looser tolerance.
    assert jnp.allclose(out, ref, rtol=3e-2, atol=3e-2), \
        float(jnp.max(jnp.abs(out - ref)))

    print("KERNEL_OK")
</pallas_src>

<mosaic_0001>
module attributes {stable_mosaic.version = 11 : i64} {
  func.func @kernel(%arg0: i32, %arg1: memref<1x18x64xf32, #tpu.memory_space<vmem>>, %arg2: memref<2x128x512xbf16, #tpu.memory_space<vmem>>, %arg3: memref<1x512xf32, #tpu.memory_space<vmem>>, %arg4: memref<1x2x16x256xf32, #tpu.memory_space<vmem>>) attributes {dimension_semantics = [#tpu.dimension_semantics<parallel>], iteration_bounds = array<i64: 2>, scalar_prefetch = 0 : i64, scratch_operands = 0 : i64, tpu.core_type = #tpu.core_type<tc>, window_params = [{transform_indices = @transform_0, window_bounds = array<i64: 1, 18, 64>}, {pipeline_mode = #tpu.pipeline_mode<synchronous>, transform_indices = @transform_1, window_bounds = array<i64: 2, 128, 512>}, {pipeline_mode = #tpu.pipeline_mode<synchronous>, transform_indices = @transform_2, window_bounds = array<i64: 1, 512>}, {transform_indices = @transform_3, window_bounds = array<i64: 1, 2, 16, 256>}]} {
    %c0 = arith.constant 0 : index
    %c0_0 = arith.constant 0 : index
    %0 = vector.load %arg3[%c0, %c0_0] : memref<1x512xf32, #tpu.memory_space<vmem>>, vector<1x512xf32>
    %c0_1 = arith.constant 0 : index
    %c0_2 = arith.constant 0 : index
    %c0_3 = arith.constant 0 : index
    %1 = vector.load %arg1[%c0_1, %c0_2, %c0_3] : memref<1x18x64xf32, #tpu.memory_space<vmem>>, vector<1x16x64xf32>
    %2 = vector.shape_cast %1 : vector<1x16x64xf32> to vector<16x64xf32>
    %c0_4 = arith.constant 0 : index
    %c1 = arith.constant 1 : index
    %c0_5 = arith.constant 0 : index
    %3 = vector.load %arg1[%c0_4, %c1, %c0_5] : memref<1x18x64xf32, #tpu.memory_space<vmem>>, vector<1x16x64xf32>
    %4 = vector.shape_cast %3 : vector<1x16x64xf32> to vector<16x64xf32>
    %c0_6 = arith.constant 0 : index
    %c2 = arith.constant 2 : index
    %c0_7 = arith.constant 0 : index
    %5 = vector.load %arg1[%c0_6, %c2, %c0_7] : memref<1x18x64xf32, #tpu.memory_space<vmem>>, vector<1x16x64xf32>
    %6 = vector.shape_cast %5 : vector<1x16x64xf32> to vector<16x64xf32>
    %7 = tpu.concatenate %2, %4 in 1 : vector<16x64xf32>, vector<16x64xf32> -> vector<16x128xf32>
    %8 = arith.truncf %7 : vector<16x128xf32> to vector<16x128xbf16>
    %c0_8 = arith.constant 0 : index
    %c0_9 = arith.constant 0 : index
    %c0_10 = arith.constant 0 : index
    %9 = vector.load %arg2[%c0_8, %c0_9, %c0_10] : memref<2x128x512xbf16, #tpu.memory_space<vmem>>, vector<1x128x512xbf16>
    %10 = vector.shape_cast %9 : vector<1x128x512xbf16> to vector<128x512xbf16>
    %cst = arith.constant dense<0.000000e+00> : vector<16x512xf32>
    %11 = tpu.matmul %8, %10, %cst {dimension_numbers = #tpu.dot_dimension_numbers<[1], [0], [0], [1], [0, 0, 1, 1], [], []>} : vector<16x128xbf16>, vector<128x512xbf16>, vector<16x512xf32> -> vector<16x512xf32>
    %12 = vector.broadcast %0 : vector<1x512xf32> to vector<16x512xf32>
    %13 = arith.addf %11, %12 : vector<16x512xf32>
    %14 = vector.extract_strided_slice %13 {offsets = [0, 256], sizes = [16, 256], strides = [1, 1]} : vector<16x512xf32> to vector<16x256xf32>
    %cst_11 = arith.constant 0.000000e+00 : f32
    %15 = vector.broadcast %cst_11 : f32 to vector<16x256xf32>
    %16 = arith.subf %15, %14 : vector<16x256xf32>
    %17 = math.exp %16 : vector<16x256xf32>
    %cst_12 = arith.constant 1.000000e+00 : f32
    %18 = vector.broadcast %cst_12 : f32 to vector<16x256xf32>
    %19 = arith.addf %18, %17 : vector<16x256xf32>
    %20 = tpu.reciprocal %19 {approx = true} : vector<16x256xf32> -> vector<16x256xf32>
    %21 = vector.extract_strided_slice %13 {offsets = [0, 0], sizes = [16, 256], strides = [1, 1]} : vector<16x512xf32> to vector<16x256xf32>
    %22 = arith.mulf %21, %20 : vector<16x256xf32>
    %c0_13 = arith.constant 0 : index
    %c0_14 = arith.constant 0 : index
    %c0_15 = arith.constant 0 : index
    %c0_16 = arith.constant 0 : index
    %23 = vector.load %arg4[%c0_13, %c0_14, %c0_15, %c0_16] : memref<1x2x16x256xf32, #tpu.memory_space<vmem>>, vector<1x1x16x256xf32>
    %24 = vector.shape_cast %23 : vector<1x1x16x256xf32> to vector<16x256xf32>
    %25 = vector.shape_cast %22 : vector<16x256xf32> to vector<1x1x16x256xf32>
    tpu.vector_store %arg4[%c0_13, %c0_14, %c0_15, %c0_16], %25 {strides = array<i32>} : memref<1x2x16x256xf32, #tpu.memory_space<vmem>>, vector<1x1x16x256xf32>,
    %26 = tpu.concatenate %4, %6 in 1 : vector<16x64xf32>, vector<16x64xf32> -> vector<16x128xf32>
    %27 = arith.truncf %26 : vector<16x128xf32> to vector<16x128xbf16>
    %c1_17 = arith.constant 1 : index
    %c0_18 = arith.constant 0 : index
    %c0_19 = arith.constant 0 : index
    %28 = vector.load %arg2[%c1_17, %c0_18, %c0_19] : memref<2x128x512xbf16, #tpu.memory_space<vmem>>, vector<1x128x512xbf16>
    %29 = vector.shape_cast %28 : vector<1x128x512xbf16> to vector<128x512xbf16>
    %cst_20 = arith.constant dense<0.000000e+00> : vector<16x512xf32>
    %30 = tpu.matmul %27, %29, %cst_20 {dimension_numbers = #tpu.dot_dimension_numbers<[1], [0], [0], [1], [0, 0, 1, 1], [], []>} : vector<16x128xbf16>, vector<128x512xbf16>, vector<16x512xf32> -> vector<16x512xf32>
    %31 = vector.broadcast %0 : vector<1x512xf32> to vector<16x512xf32>
    %32 = arith.addf %30, %31 : vector<16x512xf32>
    %33 = vector.extract_strided_slice %32 {offsets = [0, 256], sizes = [16, 256], strides = [1, 1]} : vector<16x512xf32> to vector<16x256xf32>
    %cst_21 = arith.constant 0.000000e+00 : f32
    %34 = vector.broadcast %cst_21 : f32 to vector<16x256xf32>
    %35 = arith.subf %34, %33 : vector<16x256xf32>
    %36 = math.exp %35 : vector<16x256xf32>
    %cst_22 = arith.constant 1.000000e+00 : f32
    %37 = vector.broadcast %cst_22 : f32 to vector<16x256xf32>
    %38 = arith.addf %37, %36 : vector<16x256xf32>
    %39 = tpu.reciprocal %38 {approx = true} : vector<16x256xf32> -> vector<16x256xf32>
    %40 = vector.extract_strided_slice %32 {offsets = [0, 0], sizes = [16, 256], strides = [1, 1]} : vector<16x512xf32> to vector<16x256xf32>
    %41 = arith.mulf %40, %39 : vector<16x256xf32>
    %c0_23 = arith.constant 0 : index
    %c1_24 = arith.constant 1 : index
    %c0_25 = arith.constant 0 : index
    %c0_26 = arith.constant 0 : index
    %42 = vector.load %arg4[%c0_23, %c1_24, %c0_25, %c0_26] : memref<1x2x16x256xf32, #tpu.memory_space<vmem>>, vector<1x1x16x256xf32>
    %43 = vector.shape_cast %42 : vector<1x1x16x256xf32> to vector<16x256xf32>
    %44 = vector.shape_cast %41 : vector<16x256xf32> to vector<1x1x16x256xf32>
    tpu.vector_store %arg4[%c0_23, %c1_24, %c0_25, %c0_26], %44 {strides = array<i32>} : memref<1x2x16x256xf32, #tpu.memory_space<vmem>>, vector<1x1x16x256xf32>,
    return
  }
  func.func @transform_0(%arg0: i32) -> (i32, i32, i32) {
    %c0_i32 = arith.constant 0 : i32
    %c0_i32_0 = arith.constant 0 : i32
    %c0_i32_1 = arith.constant 0 : i32
    return %arg0, %c0_i32, %c0_i32_0 : i32, i32, i32
  }
  func.func @transform_1(%arg0: i32) -> (i32, i32, i32) {
    %c0_i32 = arith.constant 0 : i32
    %c0_i32_0 = arith.constant 0 : i32
    %c0_i32_1 = arith.constant 0 : i32
    %c0_i32_2 = arith.constant 0 : i32
    return %c0_i32, %c0_i32_0, %c0_i32_1 : i32, i32, i32
  }
  func.func @transform_2(%arg0: i32) -> (i32, i32) {
    %c0_i32 = arith.constant 0 : i32
    %c0_i32_0 = arith.constant 0 : i32
    %c0_i32_1 = arith.constant 0 : i32
    return %c0_i32, %c0_i32_0 : i32, i32
  }
  func.func @transform_3(%arg0: i32) -> (i32, i32, i32, i32) {
    %c0_i32 = arith.constant 0 : i32
    %c0_i32_0 = arith.constant 0 : i32
    %c0_i32_1 = arith.constant 0 : i32
    %c0_i32_2 = arith.constant 0 : i32
    return %arg0, %c0_i32, %c0_i32_0, %c0_i32_1 : i32, i32, i32, i32
  }
}

</mosaic_0001>

<llo_original>
// kernel: tile.13
$region0: #{tile.13}
  #allocation0 [shape = 's32[1]{0}', space=sflag, size = 0x4, scoped, tag = 'scoped memory for tile.13']
  %s0 = inlined_call_operand.vmem [shape: f32[8], index: 0, kind: input, shape index: {}]
  %s1 = inlined_call_operand.vmem [shape: f32[32,8], index: 1, kind: output, shape index: {}]
  // Predicated region
  $region2: #{tile.13} parent=0 // pred_check
    _
  $region3: #{tile.13} parent=0 // pred_check_branch
    %3 = sbr.rel (0) target = $region5
  $region4: #{tile.13} parent=0 // pred_region
    _
  $region5: #{tile.13} parent=0 // pred_fallthru
    _
  %v4 = vld [vmem:[%s0] ss:$0 sm:$0xff]
  %5 = vst [vmem:[%s1] sm:$0xff] %v4
  %s6 = scalar_lea.vmem %s1, 8
  %7 = vst [vmem:[%s6] sm:$0xff] %v4
  %s8 = scalar_lea.vmem %s1, 16
  %9 = vst [vmem:[%s8] sm:$0xff] %v4
  %s10 = scalar_lea.vmem %s1, 24
  %11 = vst [vmem:[%s10] sm:$0xff] %v4

// kernel: tile.14
$region0: #{tile.14}
  %s0 = inlined_call_operand.vmem [shape: f32[32,8], index: 0, kind: input, shape index: {}]
  %s1 = inlined_call_operand.vmem [shape: f32[256], index: 1, kind: output, shape index: {}]
  $region1: #{tile.14} parent=0
    #allocation0 [shape = 'u8[4096]{0}', space=vmem, size = 0x1000, scoped, tag = 'scoped mem for output reshape']
    %s2 = smov 3
    %v3 = vld [vmem:[%s0] ss:$16 sm:%s2]
    %vm4 = vcmask 64512
    %5 = vst.msk [vmem:[#allocation0] sm:$0x3] %vm4, %v3
    %s6 = scalar_lea.vmem %s0, 15
    %s7 = smov 3
    %v8 = vld [vmem:[%s6] ss:$16 sm:%s7]
    %9 = vrot.lane.b32.xlu0 %v8, 120
    %v10 = vpop.permute.xlu0 %9
    %vm11 = vcmask 1048512
    %12 = vst.msk [vmem:[#allocation0] sm:$0x3] %vm11, %v10
    %s13 = scalar_lea.vmem %s0, 14
    %s14 = smov 3
    %v15 = vld [vmem:[%s13] ss:$16 sm:%s14]
    %16 = vrot.lane.b32.xlu0 %v15, 112
    %v17 = vpop.permute.xlu0 %16
    %vm18 = vcmask 982912
    %19 = vst.msk [vmem:[#allocation0] sm:$0x3] %vm18, %v17
    %s20 = scalar_lea.vmem %s0, 13
    %s21 = smov 3
    %v22 = vld [vmem:[%s20] ss:$16 sm:%s21]
    %23 = vrot.lane.b32.xlu0 %v22, 104
    %v24 = vpop.permute.xlu0 %23
    %vm25 = vcmask 917312
    %26 = vst.msk [vmem:[#allocation0] sm:$0x3] %vm25, %v24
    %s27 = scalar_lea.vmem %s0, 12
    %s28 = smov 3
    %v29 = vld [vmem:[%s27] ss:$16 sm:%s28]
    %30 = vrot.lane.b32.xlu0 %v29, 96
    %v31 = vpop.permute.xlu0 %30
    %vm32 = vcmask 851712
    %33 = vst.msk [vmem:[#allocation0] sm:$0x3] %vm32, %v31
    %s34 = scalar_lea.vmem %s0, 11
    %s35 = smov 3
    %v36 = vld [vmem:[%s34] ss:$16 sm:%s35]
    %37 = vrot.lane.b32.xlu0 %v36, 88
    %v38 = vpop.permute.xlu0 %37
    %vm39 = vcmask 786112
    %40 = vst.msk [vmem:[#allocation0] sm:$0x3] %vm39, %v38
    %s41 = scalar_lea.vmem %s0, 10
    %s42 = smov 3
    %v43 = vld [vmem:[%s41] ss:$16 sm:%s42]
    %44 = vrot.lane.b32.xlu0 %v43, 80
    %v45 = vpop.permute.xlu0 %44
    %vm46 = vcmask 720512
    %47 = vst.msk [vmem:[#allocation0] sm:$0x3] %vm46, %v45
    %s48 = scalar_lea.vmem %s0, 9
    %s49 = smov 3
    %v50 = vld [vmem:[%s48] ss:$16 sm:%s49]
    %51 = vrot.lane.b32.xlu0 %v50, 72
    %v52 = vpop.permute.xlu0 %51
    %vm53 = vcmask 654912
    %54 = vst.msk [vmem:[#allocation0] sm:$0x3] %vm53, %v52
    %s55 = scalar_lea.vmem %s0, 8
    %s56 = smov 3
    %v57 = vld [vmem:[%s55] ss:$16 sm:%s56]
    %58 = vrot.lane.b32.xlu0 %v57, 64
    %v59 = vpop.permute.xlu0 %58
    %vm60 = vcmask 589312
    %61 = vst.msk [vmem:[#allocation0] sm:$0x3] %vm60, %v59
    %s62 = scalar_lea.vmem %s0, 7
    %s63 = smov 3
    %v64 = vld [vmem:[%s62] ss:$16 sm:%s63]
    %65 = vrot.lane.b32.xlu0 %v64, 56
    %v66 = vpop.permute.xlu0 %65
    %vm67 = vcmask 523712
    %68 = vst.msk [vmem:[#allocation0] sm:$0x3] %vm67, %v66
    %s69 = scalar_lea.vmem %s0, 6
    %s70 = smov 3
    %v71 = vld [vmem:[%s69] ss:$16 sm:%s70]
    %72 = vrot.lane.b32.xlu0 %v71, 48
    %v73 = vpop.permute.xlu0 %72
    %vm74 = vcmask 458112
    %75 = vst.msk [vmem:[#allocation0] sm:$0x3] %vm74, %v73
    %s76 = scalar_lea.vmem %s0, 5
    %s77 = smov 3
    %v78 = vld [vmem:[%s76] ss:$16 sm:%s77]
    %79 = vrot.lane.b32.xlu0 %v78, 40
    %v80 = vpop.permute.xlu0 %79
    %vm81 = vcmask 392512
    %82 = vst.msk [vmem:[#allocation0] sm:$0x3] %vm81, %v80
    %s83 = scalar_lea.vmem %s0, 4
    %s84 = smov 3
    %v85 = vld [vmem:[%s83] ss:$16 sm:%s84]
    %86 = vrot.lane.b32.xlu0 %v85, 32
    %v87 = vpop.permute.xlu0 %86
    %vm88 = vcmask 326912
    %89 = vst.msk [vmem:[#allocation0] sm:$0x3] %vm88, %v87
    %s90 = scalar_lea.vmem %s0, 3
    %s91 = smov 3
    %v92 = vld [vmem:[%s90] ss:$16 sm:%s91]
    %93 = vrot.lane.b32.xlu0 %v92, 24
    %v94 = vpop.permute.xlu0 %93
    %vm95 = vcmask 261312
    %96 = vst.msk [vmem:[#allocation0] sm:$0x3] %vm95, %v94
    %s97 = scalar_lea.vmem %s0, 2
    %s98 = smov 3
    %v99 = vld [vmem:[%s97] ss:$16 sm:%s98]
    %100 = vrot.lane.b32.xlu0 %v99, 16
    %v101 = vpop.permute.xlu0 %100
    %vm102 = vcmask 195712
    %103 = vst.msk [vmem:[#allocation0] sm:$0x3] %vm102, %v101
    %s104 = scalar_lea.vmem %s0, 1
    %s105 = smov 3
    %v106 = vld [vmem:[%s104] ss:$16 sm:%s105]
    %107 = vrot.lane.b32.xlu0 %v106, 8
    %v108 = vpop.permute.xlu0 %107
    %vm109 = vcmask 130112
    %110 = vst.msk [vmem:[#allocation0] sm:$0x3] %vm109, %v108
    %s112 = ssub.s32 4, 1
    %v113 = vld [vmem:[#allocation0] sm:%s112]
    %s115 = ssub.s32 4, 1
    %116 = vst [vmem:[%s1] sm:%s115] %v113

// kernel: gated_deconv2d_pallas.1
$region0: #{gated_deconv2d_pallas.1}
  #allocation0 [shape = 'u32[]', space=smem, size = 0x4, offset = 0x4, fixed_abs, tag = 'smem constant byte address 0x4 - core index']
  #allocation1 [shape = 'u32[72,128]{1,0:T(1,128)}', space=vmem, size = 0x9000, scoped, tag = 'internal scratch']
  %s0 = inlined_call_operand.vmem [shape: f32[2,18,64], index: 0, kind: input, shape index: {}]
  %s1 = inlined_call_operand.vmem [shape: bf16[2,128,512], index: 1, kind: input, shape index: {}]
  %s2 = inlined_call_operand.vmem [shape: f32[1,512], index: 2, kind: input, shape index: {}]
  %s3 = inlined_call_operand.vmem [shape: f32[2,2,16,256], index: 3, kind: output, shape index: {}]
  %s4 = sld [smem:[#allocation0]]
  $region45: #{gated_deconv2d_pallas.1} parent=0
    _
  %s6 = ssub.s32 1, %s4
  %s7 = scalar_select 0, %s6, %s4
  loop: start=0, step=1, limit=4
  $region2: #{gated_deconv2d_pallas.1} parent=0 // loop_pre_header
    _
  $region3: #{gated_deconv2d_pallas.1} parent=0 // loop_header
    %s9 = sphi 0, %s13
    %p10 = scmp.ge.s32.totalorder %s9, 4
    %s19 = sphi 0, %s21
    %s22 = sphi 0, %s19
    %s23 = sphi 0, %s22
    %s39 = sphi 0, %s23
    %s43 = sphi 0, %s43
    %s45 = sphi 0, %s43
    %s46 = sphi 0, %s45
    %s60 = sphi 0, %s46
    %s64 = sphi 0, %s64
    %s66 = sphi 0, %s64
    %s67 = sphi 0, %s66
    %s81 = sphi 0, %s67
    %s87 = sphi 0, %s89
    %s90 = sphi 0, %s87
    %s91 = sphi 0, %s90
    %s107 = sphi 0, %s91
  $region4: #{gated_deconv2d_pallas.1} parent=0 // loop_header_branch
    %12 = sbr.rel (%p10) target = $region8
  $region5: #{gated_deconv2d_pallas.1} parent=0 // loop_body
    %s14 = ssub.s32 %s9, 1
    %s15 = ssub.s32 %s9, 2
    %s16 = sadd.s32 %s9, 1
    %s17 = ssub.s32 %s9, %s16
    %p18 = scmp.eq.s32.totalorder %s17, 0
    %s20 = sadd.s32 %s19, 1
    %s21 = scalar_select %p18, %s19, %s20
    %p24 = pneg %p18
    %p25 = scmp.eq.s32.totalorder %s9, 1
    %p26 = por %p24, %p25
    %p27 = scmp.ne.s32.totalorder %s19, %s22
    %p28 = scmp.eq.s32.totalorder %s9, 0
    %p29 = por %p27, %p28
    %p30 = scmp.ne.s32.totalorder %s19, %s22
    %p31 = scmp.eq.s32.totalorder %s14, 1
    %p32 = por %p30, %p31
    %p33 = scmp.ne.s32.totalorder %s22, %s23
    %p34 = scmp.eq.s32.totalorder %s14, 0
    %p35 = por %p33, %p34
    %p36 = scmp.ne.s32.totalorder %s22, %s23
    %p37 = scmp.eq.s32.totalorder %s15, 1
    %p38 = por %p36, %p37
    %p40 = scmp.ne.s32.totalorder %s23, %s39
    %p41 = scmp.eq.s32.totalorder %s15, 0
    %p42 = por %p40, %p41
    %s44 = sadd.s32 %s43, 1
    %p47 = scmp.eq.s32.totalorder %s9, 1
    %p48 = scmp.ne.s32.totalorder %s43, %s45
    %p49 = scmp.eq.s32.totalorder %s9, 0
    %p50 = por %p48, %p49
    %p51 = scmp.ne.s32.totalorder %s43, %s45
    %p52 = scmp.eq.s32.totalorder %s14, 1
    %p53 = por %p51, %p52
    %p54 = scmp.ne.s32.totalorder %s45, %s46
    %p55 = scmp.eq.s32.totalorder %s14, 0
    %p56 = por %p54, %p55
    %p57 = scmp.ne.s32.totalorder %s45, %s46
    %p58 = scmp.eq.s32.totalorder %s15, 1
    %p59 = por %p57, %p58
    %p61 = scmp.ne.s32.totalorder %s46, %s60
    %p62 = scmp.eq.s32.totalorder %s15, 0
    %p63 = por %p61, %p62
    %s65 = sadd.s32 %s64, 1
    %p68 = scmp.eq.s32.totalorder %s9, 1
    %p69 = scmp.ne.s32.totalorder %s64, %s66
    %p70 = scmp.eq.s32.totalorder %s9, 0
    %p71 = por %p69, %p70
    %p72 = scmp.ne.s32.totalorder %s64, %s66
    %p73 = scmp.eq.s32.totalorder %s14, 1
    %p74 = por %p72, %p73
    %p75 = scmp.ne.s32.totalorder %s66, %s67
    %p76 = scmp.eq.s32.totalorder %s14, 0
    %p77 = por %p75, %p76
    %p78 = scmp.ne.s32.totalorder %s66, %s67
    %p79 = scmp.eq.s32.totalorder %s15, 1
    %p80 = por %p78, %p79
    %p82 = scmp.ne.s32.totalorder %s67, %s81
    %p83 = scmp.eq.s32.totalorder %s15, 0
    %p84 = por %p82, %p83
    %s85 = ssub.s32 %s9, %s16
    %p86 = scmp.eq.s32.totalorder %s85, 0
    %s88 = sadd.s32 %s87, 1
    %s89 = scalar_select %p86, %s87, %s88
    %p92 = pneg %p86
    %p93 = scmp.eq.s32.totalorder %s9, 1
    %p94 = por %p92, %p93
    %p95 = scmp.ne.s32.totalorder %s87, %s90
    %p96 = scmp.eq.s32.totalorder %s9, 0
    %p97 = por %p95, %p96
    %p98 = scmp.ne.s32.totalorder %s87, %s90
    %p99 = scmp.eq.s32.totalorder %s14, 1
    %p100 = por %p98, %p99
    %p101 = scmp.ne.s32.totalorder %s90, %s91
    %p102 = scmp.eq.s32.totalorder %s14, 0
    %p103 = por %p101, %p102
    %p104 = scmp.ne.s32.totalorder %s90, %s91
    %p105 = scmp.eq.s32.totalorder %s15, 1
    %p106 = por %p104, %p105
    %p108 = scmp.ne.s32.totalorder %s91, %s107
    %p109 = scmp.eq.s32.totalorder %s15, 0
    %p110 = por %p108, %p109
    %p111 = scmp.le.s32.totalorder 1, %s9
    %p112 = scmp.lt.s32.totalorder %s9, 3
    %p113 = pnand %p111, %p112
    %p114 = pneg %p113
    // Predicated region
    $region9: #{gated_deconv2d_pallas.1} parent=5 // pred_check
      _
    $region10: #{gated_deconv2d_pallas.1} parent=5 // pred_check_branch
      %116 = sbr.rel (%p113) target = $region12
    $region11: #{gated_deconv2d_pallas.1} parent=5 // pred_region
      %s117 = ssub.s32 %s9, 1
      // Predicated region
      $region13: #{gated_deconv2d_pallas.1} parent=11 // pred_check
        %p118 = pneg %p56
      $region14: #{gated_deconv2d_pallas.1} parent=11 // pred_check_branch
        %120 = sbr.rel (%p118) target = $region16
      $region15: #{gated_deconv2d_pallas.1} parent=11 // pred_region
        _
      $region16: #{gated_deconv2d_pallas.1} parent=11 // pred_fallthru
        _
      // Predicated region
      $region17: #{gated_deconv2d_pallas.1} parent=11 // pred_check
        %p121 = pneg %p77
      $region18: #{gated_deconv2d_pallas.1} parent=11 // pred_check_branch
        %123 = sbr.rel (%p121) target = $region20
      $region19: #{gated_deconv2d_pallas.1} parent=11 // pred_region
        _
      $region20: #{gated_deconv2d_pallas.1} parent=11 // pred_fallthru
        _
    $region12: #{gated_deconv2d_pallas.1} parent=5 // pred_fallthru
      _
    %p124 = scmp.lt.s32.totalorder %s9, 2
    // Predicated region
    $region21: #{gated_deconv2d_pallas.1} parent=5 // pred_check
      %p125 = pneg %p124
    $region22: #{gated_deconv2d_pallas.1} parent=5 // pred_check_branch
      %127 = sbr.rel (%p125) target = $region24
    $region23: #{gated_deconv2d_pallas.1} parent=5 // pred_region
      // Predicated region
      $region25: #{gated_deconv2d_pallas.1} parent=23 // pred_check
        %p128 = pneg %p29
      $region26: #{gated_deconv2d_pallas.1} parent=23 // pred_check_branch
        %130 = sbr.rel (%p128) target = $region28
      $region27: #{gated_deconv2d_pallas.1} parent=23 // pred_region
        %p131 = scmp.lt.s32.totalorder %s9, 1
        %s132 = scalar_select %p131, %s9, 1
        %s133 = smul.addr %s132, 3
        %s134 = smul.addr %s133, 8
        %s135 = scalar_lea.vmem %s0, %s134
      $region28: #{gated_deconv2d_pallas.1} parent=23 // pred_fallthru
        _
    $region24: #{gated_deconv2d_pallas.1} parent=5 // pred_fallthru
      _
    %p136 = scmp.le.s32.totalorder 1, %s9
    %p137 = scmp.lt.s32.totalorder %s9, 3
    %p138 = pnand %p136, %p137
    %p139 = pneg %p138
    // Predicated region
    $region29: #{gated_deconv2d_pallas.1} parent=5 // pred_check
      _
    $region30: #{gated_deconv2d_pallas.1} parent=5 // pred_check_branch
      %141 = sbr.rel (%p138) target = $region32
    $region31: #{gated_deconv2d_pallas.1} parent=5 // pred_region
      %s142 = ssub.s32 %s9, 1
      %p143 = scmp.lt.s32.totalorder %s14, 1
      %s144 = scalar_select %p143, %s14, 1
      %s145 = smul.addr %s144, 3
      %s146 = smul.addr %s145, 8
      %s147 = scalar_lea.vmem %s0, %s146
      %p148 = pneg %p35
      %p149 = pneg %p32
      %p150 = pneg %p56
      %p151 = pneg %p53
      %p152 = pneg %p77
      %p153 = pneg %p74
      %p154 = pneg %p103
      %p155 = pneg %p100
      %p156 = scmp.lt.s32.totalorder %s14, 1
      %s157 = scalar_select %p156, %s14, 1
      %s158 = smul.addr %s157, 8
      %s159 = smul.addr %s158, 8
      %s160 = scalar_lea.vmem %s3, %s159
      %p161 = scmp.lt.s32.totalorder %s14, 1
      %s162 = scalar_select %p161, %s14, 1
      %s163 = smul.addr %s162, 3
      %s164 = smul.addr %s163, 8
      %s165 = scalar_lea.vmem %s0, %s164
      %p166 = scmp.lt.s32.totalorder %s14, 1
      %s167 = scalar_select %p166, %s14, 1
      %s168 = smul.addr %s167, 8
      %s169 = smul.addr %s168, 8
      %s170 = scalar_lea.vmem %s3, %s169
      %v171 = vld [vmem:[%s2] sm:$0xf]
      %v172 = vld [vmem:[%s165] sm:$0xff]
      %v173 = vld [vmem:[%s165 + $0x8] sm:$0xff]
      %v174 = vld [vmem:[%s165 + $0x1] sm:$0xff]
      %v175 = vld [vmem:[%s165 + $0x9] sm:$0xff]
      %v176 = vld [vmem:[%s165 + $0x2] sm:$0xff]
      %v177 = vld [vmem:[%s165 + $0xa] sm:$0xff]
      %180 = vrot.lane.b32.xlu0 %v174, 64
      %v181 = vpop.permute.xlu0 %180
      %182 = vrot.lane.b32.xlu0 %v175, 64
      %v183 = vpop.permute.xlu0 %182
      %vm186 = vcmask 523264
      %v187 = vsel %vm186, %v172, %v181
      %v188 = vsel %vm186, %v173, %v183
      %v189 = vpack.c.bf16 %v188, %v187
      %v190 = vld [vmem:[%s1] sm:$0xff]
      %v191 = vld [vmem:[%s1 + $0x8] sm:$0xff]
      %v192 = vld [vmem:[%s1 + $0x10] sm:$0xff]
      %v193 = vld [vmem:[%s1 + $0x18] sm:$0xff]
      %v194 = vld [vmem:[%s1 + $0x20] sm:$0xff]
      %v195 = vld [vmem:[%s1 + $0x28] sm:$0xff]
      %v196 = vld [vmem:[%s1 + $0x30] sm:$0xff]
      %v197 = vld [vmem:[%s1 + $0x38] sm:$0xff]
      %v198 = vld [vmem:[%s1 + $0x40] sm:$0xff]
      %v199 = vld [vmem:[%s1 + $0x48] sm:$0xff]
      %v200 = vld [vmem:[%s1 + $0x50] sm:$0xff]
      %v201 = vld [vmem:[%s1 + $0x58] sm:$0xff]
      %v202 = vld [vmem:[%s1 + $0x60] sm:$0xff]
      %v203 = vld [vmem:[%s1 + $0x68] sm:$0xff]
      %v204 = vld [vmem:[%s1 + $0x70] sm:$0xff]
      %v205 = vld [vmem:[%s1 + $0x78] sm:$0xff]
      %v206 = vld [vmem:[%s1 + $0x80] sm:$0xff]
      %v207 = vld [vmem:[%s1 + $0x88] sm:$0xff]
      %v208 = vld [vmem:[%s1 + $0x90] sm:$0xff]
      %v209 = vld [vmem:[%s1 + $0x98] sm:$0xff]
      %v210 = vld [vmem:[%s1 + $0xa0] sm:$0xff]
      %v211 = vld [vmem:[%s1 + $0xa8] sm:$0xff]
      %v212 = vld [vmem:[%s1 + $0xb0] sm:$0xff]
      %v213 = vld [vmem:[%s1 + $0xb8] sm:$0xff]
      %v214 = vld [vmem:[%s1 + $0xc0] sm:$0xff]
      %v215 = vld [vmem:[%s1 + $0xc8] sm:$0xff]
      %v216 = vld [vmem:[%s1 + $0xd0] sm:$0xff]
      %v217 = vld [vmem:[%s1 + $0xd8] sm:$0xff]
      %v218 = vld [vmem:[%s1 + $0xe0] sm:$0xff]
      %v219 = vld [vmem:[%s1 + $0xe8] sm:$0xff]
      %v220 = vld [vmem:[%s1 + $0xf0] sm:$0xff]
      %v221 = vld [vmem:[%s1 + $0xf8] sm:$0xff]
      %v223 = vperm.slane %v171, 0
      %v224 = vperm.slane %v171, 1
      %v225 = vperm.slane %v171, 2
      %v226 = vperm.slane %v171, 3
      %v263 = vunpack.c.l.b16 %v190
      %v264 = vunpack.c.h.b16 %v190
      %v265 = vunpack.c.l.b16 %v191
      %v266 = vunpack.c.h.b16 %v191
      %v267 = vunpack.c.l.b16 %v192
      %v268 = vunpack.c.h.b16 %v192
      %v269 = vunpack.c.l.b16 %v193
      %v270 = vunpack.c.h.b16 %v193
      %v271 = vunpack.c.l.b16 %v194
      %v272 = vunpack.c.h.b16 %v194
      %v273 = vunpack.c.l.b16 %v195
      %v274 = vunpack.c.h.b16 %v195
      %v275 = vunpack.c.l.b16 %v196
      %v276 = vunpack.c.h.b16 %v196
      %v277 = vunpack.c.l.b16 %v197
      %v278 = vunpack.c.h.b16 %v197
      %v279 = vunpack.c.l.b16 %v198
      %v280 = vunpack.c.h.b16 %v198
      %v281 = vunpack.c.l.b16 %v199
      %v282 = vunpack.c.h.b16 %v199
      %v283 = vunpack.c.l.b16 %v200
      %v284 = vunpack.c.h.b16 %v200
      %v285 = vunpack.c.l.b16 %v201
      %v286 = vunpack.c.h.b16 %v201
      %v287 = vunpack.c.l.b16 %v202
      %v288 = vunpack.c.h.b16 %v202
      %v289 = vunpack.c.l.b16 %v203
      %v290 = vunpack.c.h.b16 %v203
      %v291 = vunpack.c.l.b16 %v204
      %v292 = vunpack.c.h.b16 %v204
      %v293 = vunpack.c.l.b16 %v205
      %v294 = vunpack.c.h.b16 %v205
      %v295 = vunpack.c.l.b16 %v206
      %v296 = vunpack.c.h.b16 %v206
      %v297 = vunpack.c.l.b16 %v207
      %v298 = vunpack.c.h.b16 %v207
      %v299 = vunpack.c.l.b16 %v208
      %v300 = vunpack.c.h.b16 %v208
      %v301 = vunpack.c.l.b16 %v209
      %v302 = vunpack.c.h.b16 %v209
      %v303 = vunpack.c.l.b16 %v210
      %v304 = vunpack.c.h.b16 %v210
      %v305 = vunpack.c.l.b16 %v211
      %v306 = vunpack.c.h.b16 %v211
      %v307 = vunpack.c.l.b16 %v212
      %v308 = vunpack.c.h.b16 %v212
      %v309 = vunpack.c.l.b16 %v213
      %v310 = vunpack.c.h.b16 %v213
      %v311 = vunpack.c.l.b16 %v214
      %v312 = vunpack.c.h.b16 %v214
      %v313 = vunpack.c.l.b16 %v215
      %v314 = vunpack.c.h.b16 %v215
      %v315 = vunpack.c.l.b16 %v216
      %v316 = vunpack.c.h.b16 %v216
      %v317 = vunpack.c.l.b16 %v217
      %v318 = vunpack.c.h.b16 %v217
      %v319 = vunpack.c.l.b16 %v218
      %v320 = vunpack.c.h.b16 %v218
      %v321 = vunpack.c.l.b16 %v219
      %v322 = vunpack.c.h.b16 %v219
      %v323 = vunpack.c.l.b16 %v220
      %v324 = vunpack.c.h.b16 %v220
      %v325 = vunpack.c.l.b16 %v221
      %v326 = vunpack.c.h.b16 %v221
      %v327 = vpack.c.b16 %v267, %v263
      %v328 = vpack.c.b16 %v268, %v264
      %v329 = vpack.c.b16 %v269, %v265
      %v330 = vpack.c.b16 %v270, %v266
      %v331 = vpack.c.b16 %v275, %v271
      %v332 = vpack.c.b16 %v276, %v272
      %v333 = vpack.c.b16 %v277, %v273
      %v334 = vpack.c.b16 %v278, %v274
      %v335 = vpack.c.b16 %v283, %v279
      %v336 = vpack.c.b16 %v284, %v280
      %v337 = vpack.c.b16 %v285, %v281
      %v338 = vpack.c.b16 %v286, %v282
      %v339 = vpack.c.b16 %v291, %v287
      %v340 = vpack.c.b16 %v292, %v288
      %v341 = vpack.c.b16 %v293, %v289
      %v342 = vpack.c.b16 %v294, %v290
      %v343 = vpack.c.b16 %v299, %v295
      %v344 = vpack.c.b16 %v300, %v296
      %v345 = vpack.c.b16 %v301, %v297
      %v346 = vpack.c.b16 %v302, %v298
      %v347 = vpack.c.b16 %v307, %v303
      %v348 = vpack.c.b16 %v308, %v304
      %v349 = vpack.c.b16 %v309, %v305
      %v350 = vpack.c.b16 %v310, %v306
      %v351 = vpack.c.b16 %v315, %v311
      %v352 = vpack.c.b16 %v316, %v312
      %v353 = vpack.c.b16 %v317, %v313
      %v354 = vpack.c.b16 %v318, %v314
      %v355 = vpack.c.b16 %v323, %v319
      %v356 = vpack.c.b16 %v324, %v320
      %v357 = vpack.c.b16 %v325, %v321
      %v358 = vpack.c.b16 %v326, %v322
      %391 = vmatpush.bf16.msra.mxu0 %v355
      %392 = vmatpush.bf16.msra.mxu0 %v351
      %393 = vmatpush.bf16.msra.mxu0 %v347
      %394 = vmatpush.bf16.msra.mxu0 %v343
      %395 = vmatpush.bf16.msra.mxu0 %v339
      %396 = vmatpush.bf16.msra.mxu0 %v335
      %397 = vmatpush.bf16.msra.mxu0 %v331
      %398 = vmatpush.bf16.msra.mxu0 %v327
      %399 = vmatmul.bf16.gmra.mxu0 %v189
      %v400 = vpop.f32.mrf.mxu0
      %v401 = vadd.f32 %v223, %v400
      %v402 = vpop.f32.mrf.mxu0
      %v403 = vadd.f32 %v223, %v402
      %404 = vdwg.mxu0
      %405 = vmatpush.bf16.msra.mxu0 %v356
      %406 = vmatpush.bf16.msra.mxu0 %v352
      %407 = vmatpush.bf16.msra.mxu0 %v348
      %408 = vmatpush.bf16.msra.mxu0 %v344
      %409 = vmatpush.bf16.msra.mxu0 %v340
      %410 = vmatpush.bf16.msra.mxu0 %v336
      %411 = vmatpush.bf16.msra.mxu0 %v332
      %412 = vmatpush.bf16.msra.mxu0 %v328
      %413 = vmatmul.bf16.gmra.mxu0 %v189
      %v414 = vpop.f32.mrf.mxu0
      %v415 = vadd.f32 %v224, %v414
      %v416 = vpop.f32.mrf.mxu0
      %v417 = vadd.f32 %v224, %v416
      %418 = vdwg.mxu0
      %419 = vmatpush.bf16.msra.mxu0 %v357
      %420 = vmatpush.bf16.msra.mxu0 %v353
      %421 = vmatpush.bf16.msra.mxu0 %v349
      %422 = vmatpush.bf16.msra.mxu0 %v345
      %423 = vmatpush.bf16.msra.mxu0 %v341
      %424 = vmatpush.bf16.msra.mxu0 %v337
      %425 = vmatpush.bf16.msra.mxu0 %v333
      %426 = vmatpush.bf16.msra.mxu0 %v329
      %427 = vmatmul.bf16.gmra.mxu0 %v189
      %v428 = vpop.f32.mrf.mxu0
      %v429 = vadd.f32 %v225, %v428
      %v430 = vpop.f32.mrf.mxu0
      %v431 = vadd.f32 %v225, %v430
      %432 = vdwg.mxu0
      %433 = vmatpush.bf16.msra.mxu0 %v358
      %434 = vmatpush.bf16.msra.mxu0 %v354
      %435 = vmatpush.bf16.msra.mxu0 %v350
      %436 = vmatpush.bf16.msra.mxu0 %v346
      %437 = vmatpush.bf16.msra.mxu0 %v342
      %438 = vmatpush.bf16.msra.mxu0 %v338
      %439 = vmatpush.bf16.msra.mxu0 %v334
      %440 = vmatpush.bf16.msra.mxu0 %v330
      %441 = vmatmul.bf16.gmra.mxu0 %v189
      %v442 = vpop.f32.mrf.mxu0
      %v443 = vadd.f32 %v226, %v442
      %v444 = vpop.f32.mrf.mxu0
      %v445 = vadd.f32 %v226, %v444
      %446 = vdwg.mxu0
      %v447 = vsub.f32 0.0, %v429
      %v448 = vsub.f32 0.0, %v443
      %v449 = vsub.f32 0.0, %v431
      %v450 = vsub.f32 0.0, %v445
      %v451 = vmul.f32 %v447, 1.442695
      %v452 = vpow.pop %v451
      %v453 = vmul.f32 %v448, 1.442695
      %v454 = vpow.pop %v453
      %v455 = vmul.f32 %v449, 1.442695
      %v456 = vpow.pop %v455
      %v457 = vmul.f32 %v450, 1.442695
      %v458 = vpow.pop %v457
      %v459 = vadd.f32 %v452, 1.0
      %v460 = vadd.f32 %v454, 1.0
      %v461 = vadd.f32 %v456, 1.0
      %v462 = vadd.f32 %v458, 1.0
      %v463 = vrcp.pop %v459
      %v464 = vrcp.pop %v460
      %v465 = vrcp.pop %v461
      %v466 = vrcp.pop %v462
      %v467 = vmul.f32 %v401, %v463
      %v468 = vmul.f32 %v415, %v464
      %v469 = vmul.f32 %v403, %v465
      %v470 = vmul.f32 %v417, %v466
      %471 = vst [vmem:[%s170] sm:$0xff] %v467
      %472 = vst [vmem:[%s170 + $0x8] sm:$0xff] %v468
      %473 = vst [vmem:[%s170 + $0x10] sm:$0xff] %v469
      %474 = vst [vmem:[%s170 + $0x18] sm:$0xff] %v470
      %477 = vrot.lane.b32.xlu0 %v176, 64
      %v478 = vpop.permute.xlu0 %477
      %479 = vrot.lane.b32.xlu0 %v177, 64
      %v480 = vpop.permute.xlu0 %479
      %v483 = vsel %vm186, %v174, %v478
      %v484 = vsel %vm186, %v175, %v480
      %v485 = vpack.c.bf16 %v484, %v483
      %s486 = scalar_lea.vmem %s1, 256
      %v487 = vld [vmem:[%s486] sm:$0xff]
      %v488 = vld [vmem:[%s486 + $0x8] sm:$0xff]
      %v489 = vld [vmem:[%s486 + $0x10] sm:$0xff]
      %v490 = vld [vmem:[%s486 + $0x18] sm:$0xff]
      %v491 = vld [vmem:[%s486 + $0x20] sm:$0xff]
      %v492 = vld [vmem:[%s486 + $0x28] sm:$0xff]
      %v493 = vld [vmem:[%s486 + $0x30] sm:$0xff]
      %v494 = vld [vmem:[%s486 + $0x38] sm:$0xff]
      %v495 = vld [vmem:[%s486 + $0x40] sm:$0xff]
      %v496 = vld [vmem:[%s486 + $0x48] sm:$0xff]
      %v497 = vld [vmem:[%s486 + $0x50] sm:$0xff]
      %v498 = vld [vmem:[%s486 + $0x58] sm:$0xff]
      %v499 = vld [vmem:[%s486 + $0x60] sm:$0xff]
      %v500 = vld [vmem:[%s486 + $0x68] sm:$0xff]
      %v501 = vld [vmem:[%s486 + $0x70] sm:$0xff]
      %v502 = vld [vmem:[%s486 + $0x78] sm:$0xff]
      %v503 = vld [vmem:[%s486 + $0x80] sm:$0xff]
      %v504 = vld [vmem:[%s486 + $0x88] sm:$0xff]
      %v505 = vld [vmem:[%s486 + $0x90] sm:$0xff]
      %v506 = vld [vmem:[%s486 + $0x98] sm:$0xff]
      %v507 = vld [vmem:[%s486 + $0xa0] sm:$0xff]
      %v508 = vld [vmem:[%s486 + $0xa8] sm:$0xff]
      %v509 = vld [vmem:[%s486 + $0xb0] sm:$0xff]
      %v510 = vld [vmem:[%s486 + $0xb8] sm:$0xff]
      %v511 = vld [vmem:[%s486 + $0xc0] sm:$0xff]
      %v512 = vld [vmem:[%s486 + $0xc8] sm:$0xff]
      %v513 = vld [vmem:[%s486 + $0xd0] sm:$0xff]
      %v514 = vld [vmem:[%s486 + $0xd8] sm:$0xff]
      %v515 = vld [vmem:[%s486 + $0xe0] sm:$0xff]
      %v516 = vld [vmem:[%s486 + $0xe8] sm:$0xff]
      %v517 = vld [vmem:[%s486 + $0xf0] sm:$0xff]
      %v518 = vld [vmem:[%s486 + $0xf8] sm:$0xff]
      %v551 = vunpack.c.l.b16 %v487
      %v552 = vunpack.c.h.b16 %v487
      %v553 = vunpack.c.l.b16 %v488
      %v554 = vunpack.c.h.b16 %v488
      %v555 = vunpack.c.l.b16 %v489
      %v556 = vunpack.c.h.b16 %v489
      %v557 = vunpack.c.l.b16 %v490
      %v558 = vunpack.c.h.b16 %v490
      %v559 = vunpack.c.l.b16 %v491
      %v560 = vunpack.c.h.b16 %v491
      %v561 = vunpack.c.l.b16 %v492
      %v562 = vunpack.c.h.b16 %v492
      %v563 = vunpack.c.l.b16 %v493
      %v564 = vunpack.c.h.b16 %v493
      %v565 = vunpack.c.l.b16 %v494
      %v566 = vunpack.c.h.b16 %v494
      %v567 = vunpack.c.l.b16 %v495
      %v568 = vunpack.c.h.b16 %v495
      %v569 = vunpack.c.l.b16 %v496
      %v570 = vunpack.c.h.b16 %v496
      %v571 = vunpack.c.l.b16 %v497
      %v572 = vunpack.c.h.b16 %v497
      %v573 = vunpack.c.l.b16 %v498
      %v574 = vunpack.c.h.b16 %v498
      %v575 = vunpack.c.l.b16 %v499
      %v576 = vunpack.c.h.b16 %v499
      %v577 = vunpack.c.l.b16 %v500
      %v578 = vunpack.c.h.b16 %v500
      %v579 = vunpack.c.l.b16 %v501
      %v580 = vunpack.c.h.b16 %v501
      %v581 = vunpack.c.l.b16 %v502
      %v582 = vunpack.c.h.b16 %v502
      %v583 = vunpack.c.l.b16 %v503
      %v584 = vunpack.c.h.b16 %v503
      %v585 = vunpack.c.l.b16 %v504
      %v586 = vunpack.c.h.b16 %v504
      %v587 = vunpack.c.l.b16 %v505
      %v588 = vunpack.c.h.b16 %v505
      %v589 = vunpack.c.l.b16 %v506
      %v590 = vunpack.c.h.b16 %v506
      %v591 = vunpack.c.l.b16 %v507
      %v592 = vunpack.c.h.b16 %v507
      %v593 = vunpack.c.l.b16 %v508
      %v594 = vunpack.c.h.b16 %v508
      %v595 = vunpack.c.l.b16 %v509
      %v596 = vunpack.c.h.b16 %v509
      %v597 = vunpack.c.l.b16 %v510
      %v598 = vunpack.c.h.b16 %v510
      %v599 = vunpack.c.l.b16 %v511
      %v600 = vunpack.c.h.b16 %v511
      %v601 = vunpack.c.l.b16 %v512
      %v602 = vunpack.c.h.b16 %v512
      %v603 = vunpack.c.l.b16 %v513
      %v604 = vunpack.c.h.b16 %v513
      %v605 = vunpack.c.l.b16 %v514
      %v606 = vunpack.c.h.b16 %v514
      %v607 = vunpack.c.l.b16 %v515
      %v608 = vunpack.c.h.b16 %v515
      %v609 = vunpack.c.l.b16 %v516
      %v610 = vunpack.c.h.b16 %v516
      %v611 = vunpack.c.l.b16 %v517
      %v612 = vunpack.c.h.b16 %v517
      %v613 = vunpack.c.l.b16 %v518
      %v614 = vunpack.c.h.b16 %v518
      %v615 = vpack.c.b16 %v555, %v551
      %v616 = vpack.c.b16 %v556, %v552
      %v617 = vpack.c.b16 %v557, %v553
      %v618 = vpack.c.b16 %v558, %v554
      %v619 = vpack.c.b16 %v563, %v559
      %v620 = vpack.c.b16 %v564, %v560
      %v621 = vpack.c.b16 %v565, %v561
      %v622 = vpack.c.b16 %v566, %v562
      %v623 = vpack.c.b16 %v571, %v567
      %v624 = vpack.c.b16 %v572, %v568
      %v625 = vpack.c.b16 %v573, %v569
      %v626 = vpack.c.b16 %v574, %v570
      %v627 = vpack.c.b16 %v579, %v575
      %v628 = vpack.c.b16 %v580, %v576
      %v629 = vpack.c.b16 %v581, %v577
      %v630 = vpack.c.b16 %v582, %v578
      %v631 = vpack.c.b16 %v587, %v583
      %v632 = vpack.c.b16 %v588, %v584
      %v633 = vpack.c.b16 %v589, %v585
      %v634 = vpack.c.b16 %v590, %v586
      %v635 = vpack.c.b16 %v595, %v591
      %v636 = vpack.c.b16 %v596, %v592
      %v637 = vpack.c.b16 %v597, %v593
      %v638 = vpack.c.b16 %v598, %v594
      %v639 = vpack.c.b16 %v603, %v599
      %v640 = vpack.c.b16 %v604, %v600
      %v641 = vpack.c.b16 %v605, %v601
      %v642 = vpack.c.b16 %v606, %v602
      %v643 = vpack.c.b16 %v611, %v607
      %v644 = vpack.c.b16 %v612, %v608
      %v645 = vpack.c.b16 %v613, %v609
      %v646 = vpack.c.b16 %v614, %v610
      %679 = vmatpush.bf16.msra.mxu0 %v643
      %680 = vmatpush.bf16.msra.mxu0 %v639
      %681 = vmatpush.bf16.msra.mxu0 %v635
      %682 = vmatpush.bf16.msra.mxu0 %v631
      %683 = vmatpush.bf16.msra.mxu0 %v627
      %684 = vmatpush.bf16.msra.mxu0 %v623
      %685 = vmatpush.bf16.msra.mxu0 %v619
      %686 = vmatpush.bf16.msra.mxu0 %v615
      %687 = vmatmul.bf16.gmra.mxu0 %v485
      %v688 = vpop.f32.mrf.mxu0
      %v689 = vadd.f32 %v223, %v688
      %v690 = vpop.f32.mrf.mxu0
      %v691 = vadd.f32 %v223, %v690
      %692 = vdwg.mxu0
      %693 = vmatpush.bf16.msra.mxu0 %v644
      %694 = vmatpush.bf16.msra.mxu0 %v640
      %695 = vmatpush.bf16.msra.mxu0 %v636
      %696 = vmatpush.bf16.msra.mxu0 %v632
      %697 = vmatpush.bf16.msra.mxu0 %v628
      %698 = vmatpush.bf16.msra.mxu0 %v624
      %699 = vmatpush.bf16.msra.mxu0 %v620
      %700 = vmatpush.bf16.msra.mxu0 %v616
      %701 = vmatmul.bf16.gmra.mxu0 %v485
      %v702 = vpop.f32.mrf.mxu0
      %v703 = vadd.f32 %v224, %v702
      %v704 = vpop.f32.mrf.mxu0
      %v705 = vadd.f32 %v224, %v704
      %706 = vdwg.mxu0
      %707 = vmatpush.bf16.msra.mxu0 %v645
      %708 = vmatpush.bf16.msra.mxu0 %v641
      %709 = vmatpush.bf16.msra.mxu0 %v637
      %710 = vmatpush.bf16.msra.mxu0 %v633
      %711 = vmatpush.bf16.msra.mxu0 %v629
      %712 = vmatpush.bf16.msra.mxu0 %v625
      %713 = vmatpush.bf16.msra.mxu0 %v621
      %714 = vmatpush.bf16.msra.mxu0 %v617
      %715 = vmatmul.bf16.gmra.mxu0 %v485
      %v716 = vpop.f32.mrf.mxu0
      %v717 = vadd.f32 %v225, %v716
      %v718 = vpop.f32.mrf.mxu0
      %v719 = vadd.f32 %v225, %v718
      %720 = vdwg.mxu0
      %721 = vmatpush.bf16.msra.mxu0 %v646
      %722 = vmatpush.bf16.msra.mxu0 %v642
      %723 = vmatpush.bf16.msra.mxu0 %v638
      %724 = vmatpush.bf16.msra.mxu0 %v634
      %725 = vmatpush.bf16.msra.mxu0 %v630
      %726 = vmatpush.bf16.msra.mxu0 %v626
      %727 = vmatpush.bf16.msra.mxu0 %v622
      %728 = vmatpush.bf16.msra.mxu0 %v618
      %729 = vmatmul.bf16.gmra.mxu0 %v485
      %v730 = vpop.f32.mrf.mxu0
      %v731 = vadd.f32 %v226, %v730
      %v732 = vpop.f32.mrf.mxu0
      %v733 = vadd.f32 %v226, %v732
      %734 = vdwg.mxu0
      %v735 = vsub.f32 0.0, %v717
      %v736 = vsub.f32 0.0, %v731
      %v737 = vsub.f32 0.0, %v719
      %v738 = vsub.f32 0.0, %v733
      %v739 = vmul.f32 %v735, 1.442695
      %v740 = vpow.pop %v739
      %v741 = vmul.f32 %v736, 1.442695
      %v742 = vpow.pop %v741
      %v743 = vmul.f32 %v737, 1.442695
      %v744 = vpow.pop %v743
      %v745 = vmul.f32 %v738, 1.442695
      %v746 = vpow.pop %v745
      %v747 = vadd.f32 %v740, 1.0
      %v748 = vadd.f32 %v742, 1.0
      %v749 = vadd.f32 %v744, 1.0
      %v750 = vadd.f32 %v746, 1.0
      %v751 = vrcp.pop %v747
      %v752 = vrcp.pop %v748
      %v753 = vrcp.pop %v749
      %v754 = vrcp.pop %v750
      %v755 = vmul.f32 %v689, %v751
      %v756 = vmul.f32 %v703, %v752
      %v757 = vmul.f32 %v691, %v753
      %v758 = vmul.f32 %v705, %v754
      %s759 = scalar_lea.vmem %s170, 32
      %760 = vst [vmem:[%s759] sm:$0xff] %v755
      %761 = vst [vmem:[%s759 + $0x8] sm:$0xff] %v756
      %762 = vst [vmem:[%s759 + $0x10] sm:$0xff] %v757
      %763 = vst [vmem:[%s759 + $0x18] sm:$0xff] %v758
      %p764 = scmp.lt.s32.totalorder %s14, 1
      %s765 = scalar_select %p764, %s14, 1
      %s766 = smul.addr %s765, 8
      %s767 = smul.addr %s766, 8
      %s768 = scalar_lea.vmem %s3, %s767
      // Predicated region
      $region33: #{gated_deconv2d_pallas.1} parent=31 // pred_check
        %p769 = pneg %p100
      $region34: #{gated_deconv2d_pallas.1} parent=31 // pred_check_branch
        %771 = sbr.rel (%p769) target = $region36
      $region35: #{gated_deconv2d_pallas.1} parent=31 // pred_region
        _
      $region36: #{gated_deconv2d_pallas.1} parent=31 // pred_fallthru
        _
    $region32: #{gated_deconv2d_pallas.1} parent=5 // pred_fallthru
      _
    %p772 = scmp.le.s32.totalorder 2, %s9
    // Predicated region
    $region37: #{gated_deconv2d_pallas.1} parent=5 // pred_check
      %p773 = pneg %p772
    $region38: #{gated_deconv2d_pallas.1} parent=5 // pred_check_branch
      %775 = sbr.rel (%p773) target = $region40
    $region39: #{gated_deconv2d_pallas.1} parent=5 // pred_region
      %s776 = ssub.s32 %s9, 2
      // Predicated region
      $region41: #{gated_deconv2d_pallas.1} parent=39 // pred_check
        %p777 = pneg %p106
      $region42: #{gated_deconv2d_pallas.1} parent=39 // pred_check_branch
        %779 = sbr.rel (%p777) target = $region44
      $region43: #{gated_deconv2d_pallas.1} parent=39 // pred_region
        %p780 = scmp.lt.s32.totalorder %s15, 1
        %s781 = scalar_select %p780, %s15, 1
        %s782 = smul.addr %s781, 8
        %s783 = smul.addr %s782, 8
        %s784 = scalar_lea.vmem %s3, %s783
      $region44: #{gated_deconv2d_pallas.1} parent=39 // pred_fallthru
        _
    $region40: #{gated_deconv2d_pallas.1} parent=5 // pred_fallthru
      _
  $region6: #{gated_deconv2d_pallas.1} parent=0 // loop_footer
    %s13 = sadd.s32 1, %s9
  $region7: #{gated_deconv2d_pallas.1} parent=0 // loop_footer_branch
    %8 = sbr.rel target = $region3
  $region8: #{gated_deconv2d_pallas.1} parent=0 // loop_exit
    _

</llo_original>
